<compile_context>
chip_gen: v5e
topology: v5e:2x2
jax: 0.10.0
libtpu: 0.0.40
codegen_flags: <defaults>
</compile_context>

<pallas_src>
import jax
import jax.numpy as jnp
from jax.experimental import pallas as pl
from jax.experimental.pallas import tpu as pltpu


def _round_up(x, m):
    return ((x + m - 1) // m) * m


# ---------------------------------------------------------------------------
# Glue: [B, N, H*W] bilinear sampling weights (F.grid_sample, zeros padding,
# align_corners=True).  Pure index arithmetic / one-hot construction in JAX.
# ---------------------------------------------------------------------------
def bilinear_weights(points, H, W):
    # points: [B, N, 2] normalized coords in [-1, 1], (x, y) like F.grid_sample
    B, N, _ = points.shape
    x = points[..., 0]
    y = points[..., 1]
    ix = (x + 1.0) * 0.5 * (W - 1)   # align_corners=True
    iy = (y + 1.0) * 0.5 * (H - 1)
    x0 = jnp.floor(ix)
    y0 = jnp.floor(iy)
    x1 = x0 + 1.0
    y1 = y0 + 1.0
    corners = [
        (x0, y0, (x1 - ix) * (y1 - iy)),
        (x1, y0, (ix - x0) * (y1 - iy)),
        (x0, y1, (x1 - ix) * (iy - y0)),
        (x1, y1, (ix - x0) * (iy - y0)),
    ]
    bw = jnp.zeros((B, N, H * W), jnp.float32)
    for cx, cy, w in corners:
        # zeros padding: out-of-bounds corners contribute nothing
        valid = ((cx >= 0) & (cx <= W - 1) & (cy >= 0) & (cy <= H - 1)).astype(jnp.float32)
        cxi = jnp.clip(cx, 0, W - 1).astype(jnp.int32)
        cyi = jnp.clip(cy, 0, H - 1).astype(jnp.int32)
        flat = cyi * W + cxi                                        # [B, N]
        oh = jax.nn.one_hot(flat, H * W, dtype=jnp.float32)         # [B, N, HW]
        bw = bw + oh * (w * valid)[..., None]
    return bw                                                        # [B, N, HW]


# ---------------------------------------------------------------------------
# Pallas kernel: one point-tile of the forward (grid-sample, 3x Conv1d-k1 MLP,
# partial fc fold).  Activations are [B*tN, C] (points on sublanes, channels
# on lanes).
# ---------------------------------------------------------------------------
def maf_kernel(bw_ref, im_ref, w0_ref, b0_ref, w1a_ref, w1b_ref, b1_ref,
               w2a_ref, w2b_ref, b2_ref, wr_ref, out_ref):
    f32 = jnp.float32
    B, tN, _ = bw_ref.shape

    # grid_sample for this point tile: per-batch lane-dense [tN, HW] @ [HW, 256]
    # dots (bf16 in, f32 acc), stacked so the conv matmuls run with M = B*tN.
    pf = jnp.concatenate(
        [jnp.dot(bw_ref[b], im_ref[b], preferred_element_type=f32).astype(jnp.bfloat16)
         for b in range(B)],
        axis=0)                                                           # [B*tN, 256] bf16

    # conv0: Conv1d(256 -> 128, k=1) + leaky_relu(0.01)
    y0 = jnp.dot(pf, w0_ref[...], preferred_element_type=f32) + b0_ref[...]
    y0 = jnp.where(y0 > 0, y0, 0.01 * y0).astype(jnp.bfloat16)            # [B*tN, 128]

    # conv1: Conv1d(128+256 -> 64, k=1) on concat([y0, pf]) via split weights
    y1 = (jnp.dot(y0, w1a_ref[...], preferred_element_type=f32)
          + jnp.dot(pf, w1b_ref[...], preferred_element_type=f32)
          + b1_ref[...])
    y1 = jnp.where(y1 > 0, y1, 0.01 * y1).astype(jnp.bfloat16)            # [B*tN, 64]

    # conv2: Conv1d(64+256 -> 5, k=1) on concat([y1, pf]) + last_op ReLU
    y2 = (jnp.dot(y1, w2a_ref[...], preferred_element_type=f32)
          + jnp.dot(pf, w2b_ref[...], preferred_element_type=f32)
          + b2_ref[...])
    y2 = jnp.maximum(y2, 0.0)                                             # [B*tN, 5] f32

    # fc partial for this tile: per-point contraction over the 5 channels via
    # VPU broadcast-FMAs against contiguous [tN, 256] weight slabs (leading-axis
    # indexed), then a sublane (XLU) fold over the tile's points.  No tiny-M
    # MXU dot; the cross-tile fold happens in XLA on the [T, B, 256] partials.
    for b in range(B):
        y2b = y2[b * tN:(b + 1) * tN, :]
        acc = y2b[:, 0:1] * wr_ref[0]
        for c in range(1, 5):
            acc = acc + y2b[:, c:c + 1] * wr_ref[c]
        out_ref[0, b, :] = jnp.sum(acc, axis=0)


def maf_forward(points, s_feat, params, *, tile_n=256):
    """points: [B, N, 2] grid_sample coords, s_feat: [B, 256, H, W] -> [B, 236]."""
    W0, b0, W1, b1, W2, b2, Wfc, bfc = params
    B, C, H, W = s_feat.shape
    N = points.shape[1]
    HW = H * W
    OUTP = 256  # fc output lanes padded 236 -> 256 (full-lane store)

    tN = tile_n if N >= tile_n else _round_up(N, 8)   # sublane-aligned point tile
    N_pad = _round_up(N, tN)
    T = N_pad // tN

    # grid_sample as per-batch dense matmuls against precomputed bilinear
    # one-hot weights (zeros padding + align_corners=True handled above).
    # TODO(synk): at production H*W replace with an in-kernel gather
    # (scalar-prefetch the 4 corner indices/weights; 4 row loads + FMAs/point).
    bw = bilinear_weights(points, H, W)                                   # [B, N, HW]
    bw = jnp.pad(bw, ((0, 0), (0, N_pad - N), (0, 0))).astype(jnp.bfloat16)

    # NCHW -> NHWC, flattened so channels sit on lanes; whole map VMEM-resident.
    im_flat = jnp.transpose(s_feat, (0, 2, 3, 1)).reshape(B, HW, C).astype(jnp.bfloat16)

    # Conv1d(k=1) weights transposed to [C_in, C_out]; concat inputs -> split weights.
    w0t = W0.T.astype(jnp.bfloat16)                                       # [256, 128]
    w1at = W1[:, :128].T.astype(jnp.bfloat16)                             # [128, 64]
    w1bt = W1[:, 128:].T.astype(jnp.bfloat16)                             # [256, 64]
    w2at = W2[:, :64].T.astype(jnp.bfloat16)                              # [64, 5]
    w2bt = W2[:, 64:].T.astype(jnp.bfloat16)                              # [256, 5]
    b0r, b1r, b2r = b0[None, :], b1[None, :], b2[None, :]

    # fc weights reordered to [5, N, 236] (columns of y.view(B,-1) are c-major),
    # lane-padded to 256, point axis zero-padded to N_pad (padded points thus
    # contribute nothing).  Shared across B via the index_map — no jnp.tile.
    wr = Wfc.T.reshape(5, N, 236)
    wr = jnp.pad(wr, ((0, 0), (0, N_pad - N), (0, OUTP - 236)))           # [5, N_pad, 256] f32
    bfc_pad = jnp.pad(bfc, (0, OUTP - 236))

    # Explicit scoped-VMEM budget: double-buffered tiles + resident weights.
    tile_bytes = B * tN * HW * 2 + 5 * tN * OUTP * 4 + B * OUTP * 4
    resident_bytes = (B * HW * C * 2
                      + 2 * (w0t.size + w1at.size + w1bt.size + w2at.size + w2bt.size)
                      + 4 * (b0r.size + b1r.size + b2r.size))
    act_bytes = 8 * B * tN * OUTP * 4
    vmem_limit = 2 * tile_bytes + resident_bytes + act_bytes + (4 << 20)
    vmem_limit = int(max(min(vmem_limit, 64 << 20), 16 << 20))

    grid_spec = pltpu.PrefetchScalarGridSpec(
        num_scalar_prefetch=0,
        grid=(T,),
        in_specs=[
            pl.BlockSpec((B, tN, HW), lambda t: (0, t, 0)),               # bw tile
            pl.BlockSpec((B, HW, C), lambda t: (0, 0, 0)),                # im (resident)
            pl.BlockSpec((C, 128), lambda t: (0, 0)),                     # w0
            pl.BlockSpec((1, 128), lambda t: (0, 0)),                     # b0
            pl.BlockSpec((128, 64), lambda t: (0, 0)),                    # w1a
            pl.BlockSpec((C, 64), lambda t: (0, 0)),                      # w1b
            pl.BlockSpec((1, 64), lambda t: (0, 0)),                      # b1
            pl.BlockSpec((64, 5), lambda t: (0, 0)),                      # w2a
            pl.BlockSpec((C, 5), lambda t: (0, 0)),                       # w2b
            pl.BlockSpec((1, 5), lambda t: (0, 0)),                       # b2
            pl.BlockSpec((5, tN, OUTP), lambda t: (0, t, 0)),             # wr tile
        ],
        out_specs=pl.BlockSpec((1, B, OUTP), lambda t: (t, 0, 0)),
    )

    partials = pl.pallas_call(
        maf_kernel,
        out_shape=jax.ShapeDtypeStruct((T, B, OUTP), jnp.float32),
        grid_spec=grid_spec,
        compiler_params=pltpu.CompilerParams(
            dimension_semantics=("parallel",),
            vmem_limit_bytes=vmem_limit),
    )(bw, im_flat, w0t, b0r, w1at, w1bt, b1r, w2at, w2bt, b2r, wr)

    out = jnp.sum(partials, axis=0) + bfc_pad[None, :]                    # fold tiles in XLA
    return out[:, :236]


# ---------------------------------------------------------------------------
# Pure-JAX f32 reference (mirrors the PyTorch forward) for a correctness check.
# ---------------------------------------------------------------------------
def ref_forward(points, s_feat, params):
    W0, b0, W1, b1, W2, b2, Wfc, bfc = params
    B, C, H, W = s_feat.shape
    bw = bilinear_weights(points, H, W)                                   # [B, N, HW]
    pf = jnp.einsum('bns,bcs->bcn', bw, s_feat.reshape(B, C, H * W))
    lrelu = lambda v: jnp.where(v > 0, v, 0.01 * v)
    y0 = lrelu(jnp.einsum('oc,bcn->bon', W0, pf) + b0[None, :, None])
    y1 = lrelu(jnp.einsum('oc,bcn->bon', W1, jnp.concatenate([y0, pf], 1)) + b1[None, :, None])
    y2 = jnp.einsum('oc,bcn->bon', W2, jnp.concatenate([y1, pf], 1)) + b2[None, :, None]
    y2 = jnp.maximum(y2, 0.0)
    yf = y2.reshape(B, -1)                                                # c-major like .view()
    return yf @ Wfc.T + bfc[None, :]


def init_params(key, num_points):
    ks = jax.random.split(key, 8)
    w = lambda k, shape, s: jax.random.normal(k, shape, jnp.float32) * s
    W0, b0 = w(ks[0], (128, 256), 0.05), w(ks[1], (128,), 0.05)
    W1, b1 = w(ks[2], (64, 384), 0.05), w(ks[3], (64,), 0.05)
    W2, b2 = w(ks[4], (5, 320), 0.05), w(ks[5], (5,), 0.05)
    Wfc, bfc = w(ks[6], (236, 5 * num_points), 0.05), w(ks[7], (236,), 0.05)
    return (W0, b0, W1, b1, W2, b2, Wfc, bfc)


if __name__ == "__main__":
    key = jax.random.PRNGKey(0)
    k_feat, k_pts, k_par = jax.random.split(key, 3)

    B, C_s, H, W = 2, 256, 8, 8          # C_s must be 256 (filter_channels[0])
    N = 8                                 # num_points (fc in_features = 5*N = 40)

    s_feat = jax.random.normal(k_feat, (B, C_s, H, W), jnp.float32)
    # p: 2D image coordinates of the mesh points as consumed by grid_sample
    p = jax.random.uniform(k_pts, (B, N, 2), jnp.float32, minval=-1.0, maxval=1.0)
    params = init_params(k_par, N)

    out = jax.block_until_ready(maf_forward(p, s_feat, params))

    ref = ref_forward(p, s_feat, params)
    assert out.shape == (B, 236), out.shape
    assert bool(jnp.allclose(out, ref, atol=3e-2, rtol=3e-2)), \
        f"max abs err {float(jnp.max(jnp.abs(out - ref)))}"

    print("KERNEL_OK")
</pallas_src>

<mosaic_0001>
module attributes {stable_mosaic.version = 11 : i64} {
  func.func @maf_kernel(%arg0: i32, %arg1: memref<2x8x64xbf16, #tpu.memory_space<vmem>>, %arg2: memref<2x64x256xbf16, #tpu.memory_space<vmem>>, %arg3: memref<256x128xbf16, #tpu.memory_space<vmem>>, %arg4: memref<1x128xf32, #tpu.memory_space<vmem>>, %arg5: memref<128x64xbf16, #tpu.memory_space<vmem>>, %arg6: memref<256x64xbf16, #tpu.memory_space<vmem>>, %arg7: memref<1x64xf32, #tpu.memory_space<vmem>>, %arg8: memref<64x5xbf16, #tpu.memory_space<vmem>>, %arg9: memref<256x5xbf16, #tpu.memory_space<vmem>>, %arg10: memref<1x5xf32, #tpu.memory_space<vmem>>, %arg11: memref<5x8x256xf32, #tpu.memory_space<vmem>>, %arg12: memref<1x2x256xf32, #tpu.memory_space<vmem>>) attributes {dimension_semantics = [#tpu.dimension_semantics<parallel>], iteration_bounds = array<i64: 1>, scalar_prefetch = 0 : i64, scratch_operands = 0 : i64, tpu.core_type = #tpu.core_type<tc>, window_params = [{transform_indices = @transform_0, window_bounds = array<i64: 2, 8, 64>}, {pipeline_mode = #tpu.pipeline_mode<synchronous>, transform_indices = @transform_1, window_bounds = array<i64: 2, 64, 256>}, {pipeline_mode = #tpu.pipeline_mode<synchronous>, transform_indices = @transform_2, window_bounds = array<i64: 256, 128>}, {pipeline_mode = #tpu.pipeline_mode<synchronous>, transform_indices = @transform_3, window_bounds = array<i64: 1, 128>}, {pipeline_mode = #tpu.pipeline_mode<synchronous>, transform_indices = @transform_4, window_bounds = array<i64: 128, 64>}, {pipeline_mode = #tpu.pipeline_mode<synchronous>, transform_indices = @transform_5, window_bounds = array<i64: 256, 64>}, {pipeline_mode = #tpu.pipeline_mode<synchronous>, transform_indices = @transform_6, window_bounds = array<i64: 1, 64>}, {pipeline_mode = #tpu.pipeline_mode<synchronous>, transform_indices = @transform_7, window_bounds = array<i64: 64, 5>}, {pipeline_mode = #tpu.pipeline_mode<synchronous>, transform_indices = @transform_8, window_bounds = array<i64: 256, 5>}, {pipeline_mode = #tpu.pipeline_mode<synchronous>, transform_indices = @transform_9, window_bounds = array<i64: 1, 5>}, {transform_indices = @transform_10, window_bounds = array<i64: 5, 8, 256>}, {transform_indices = @transform_11, window_bounds = array<i64: 1, 2, 256>}]} {
    %c0 = arith.constant 0 : index
    %c0_0 = arith.constant 0 : index
    %c0_1 = arith.constant 0 : index
    %0 = vector.load %arg1[%c0, %c0_0, %c0_1] : memref<2x8x64xbf16, #tpu.memory_space<vmem>>, vector<1x8x64xbf16>
    %1 = vector.shape_cast %0 : vector<1x8x64xbf16> to vector<8x64xbf16>
    %c0_2 = arith.constant 0 : index
    %c0_3 = arith.constant 0 : index
    %c0_4 = arith.constant 0 : index
    %2 = vector.load %arg2[%c0_2, %c0_3, %c0_4] : memref<2x64x256xbf16, #tpu.memory_space<vmem>>, vector<1x64x256xbf16>
    %3 = vector.shape_cast %2 : vector<1x64x256xbf16> to vector<64x256xbf16>
    %cst = arith.constant dense<0.000000e+00> : vector<8x256xf32>
    %4 = tpu.matmul %1, %3, %cst {dimension_numbers = #tpu.dot_dimension_numbers<[1], [0], [0], [1], [0, 0, 1, 1], [], []>} : vector<8x64xbf16>, vector<64x256xbf16>, vector<8x256xf32> -> vector<8x256xf32>
    %5 = arith.truncf %4 : vector<8x256xf32> to vector<8x256xbf16>
    %c1 = arith.constant 1 : index
    %c0_5 = arith.constant 0 : index
    %c0_6 = arith.constant 0 : index
    %6 = vector.load %arg1[%c1, %c0_5, %c0_6] : memref<2x8x64xbf16, #tpu.memory_space<vmem>>, vector<1x8x64xbf16>
    %7 = vector.shape_cast %6 : vector<1x8x64xbf16> to vector<8x64xbf16>
    %c1_7 = arith.constant 1 : index
    %c0_8 = arith.constant 0 : index
    %c0_9 = arith.constant 0 : index
    %8 = vector.load %arg2[%c1_7, %c0_8, %c0_9] : memref<2x64x256xbf16, #tpu.memory_space<vmem>>, vector<1x64x256xbf16>
    %9 = vector.shape_cast %8 : vector<1x64x256xbf16> to vector<64x256xbf16>
    %cst_10 = arith.constant dense<0.000000e+00> : vector<8x256xf32>
    %10 = tpu.matmul %7, %9, %cst_10 {dimension_numbers = #tpu.dot_dimension_numbers<[1], [0], [0], [1], [0, 0, 1, 1], [], []>} : vector<8x64xbf16>, vector<64x256xbf16>, vector<8x256xf32> -> vector<8x256xf32>
    %11 = arith.truncf %10 : vector<8x256xf32> to vector<8x256xbf16>
    %12 = tpu.concatenate %5, %11 in 0 : vector<8x256xbf16>, vector<8x256xbf16> -> vector<16x256xbf16>
    %c0_11 = arith.constant 0 : index
    %c0_12 = arith.constant 0 : index
    %13 = vector.load %arg3[%c0_11, %c0_12] : memref<256x128xbf16, #tpu.memory_space<vmem>>, vector<256x128xbf16>
    %cst_13 = arith.constant dense<0.000000e+00> : vector<16x128xf32>
    %14 = tpu.matmul %12, %13, %cst_13 {dimension_numbers = #tpu.dot_dimension_numbers<[1], [0], [0], [1], [0, 0, 1, 1], [], []>} : vector<16x256xbf16>, vector<256x128xbf16>, vector<16x128xf32> -> vector<16x128xf32>
    %c0_14 = arith.constant 0 : index
    %c0_15 = arith.constant 0 : index
    %15 = vector.load %arg4[%c0_14, %c0_15] : memref<1x128xf32, #tpu.memory_space<vmem>>, vector<1x128xf32>
    %16 = vector.broadcast %15 : vector<1x128xf32> to vector<16x128xf32>
    %17 = arith.addf %14, %16 : vector<16x128xf32>
    %cst_16 = arith.constant 0.000000e+00 : f32
    %18 = vector.broadcast %cst_16 : f32 to vector<16x128xf32>
    %19 = arith.cmpf ogt, %17, %18 : vector<16x128xf32>
    %cst_17 = arith.constant 0.00999999977 : f32
    %20 = vector.broadcast %cst_17 : f32 to vector<16x128xf32>
    %21 = arith.mulf %20, %17 : vector<16x128xf32>
    %22 = arith.select %19, %17, %21 : vector<16x128xi1>, vector<16x128xf32>
    %23 = arith.truncf %22 : vector<16x128xf32> to vector<16x128xbf16>
    %c0_18 = arith.constant 0 : index
    %c0_19 = arith.constant 0 : index
    %24 = vector.load %arg5[%c0_18, %c0_19] : memref<128x64xbf16, #tpu.memory_space<vmem>>, vector<128x64xbf16>
    %cst_20 = arith.constant dense<0.000000e+00> : vector<16x64xf32>
    %25 = tpu.matmul %23, %24, %cst_20 {dimension_numbers = #tpu.dot_dimension_numbers<[1], [0], [0], [1], [0, 0, 1, 1], [], []>} : vector<16x128xbf16>, vector<128x64xbf16>, vector<16x64xf32> -> vector<16x64xf32>
    %c0_21 = arith.constant 0 : index
    %c0_22 = arith.constant 0 : index
    %26 = vector.load %arg6[%c0_21, %c0_22] : memref<256x64xbf16, #tpu.memory_space<vmem>>, vector<256x64xbf16>
    %cst_23 = arith.constant dense<0.000000e+00> : vector<16x64xf32>
    %27 = tpu.matmul %12, %26, %cst_23 {dimension_numbers = #tpu.dot_dimension_numbers<[1], [0], [0], [1], [0, 0, 1, 1], [], []>} : vector<16x256xbf16>, vector<256x64xbf16>, vector<16x64xf32> -> vector<16x64xf32>
    %28 = arith.addf %25, %27 : vector<16x64xf32>
    %c0_24 = arith.constant 0 : index
    %c0_25 = arith.constant 0 : index
    %29 = vector.load %arg7[%c0_24, %c0_25] : memref<1x64xf32, #tpu.memory_space<vmem>>, vector<1x64xf32>
    %30 = vector.broadcast %29 : vector<1x64xf32> to vector<16x64xf32>
    %31 = arith.addf %28, %30 : vector<16x64xf32>
    %cst_26 = arith.constant 0.000000e+00 : f32
    %32 = vector.broadcast %cst_26 : f32 to vector<16x64xf32>
    %33 = arith.cmpf ogt, %31, %32 : vector<16x64xf32>
    %cst_27 = arith.constant 0.00999999977 : f32
    %34 = vector.broadcast %cst_27 : f32 to vector<16x64xf32>
    %35 = arith.mulf %34, %31 : vector<16x64xf32>
    %36 = arith.select %33, %31, %35 : vector<16x64xi1>, vector<16x64xf32>
    %37 = arith.truncf %36 : vector<16x64xf32> to vector<16x64xbf16>
    %c0_28 = arith.constant 0 : index
    %c0_29 = arith.constant 0 : index
    %38 = vector.load %arg8[%c0_28, %c0_29] : memref<64x5xbf16, #tpu.memory_space<vmem>>, vector<64x5xbf16>
    %cst_30 = arith.constant dense<0.000000e+00> : vector<16x5xf32>
    %39 = tpu.matmul %37, %38, %cst_30 {dimension_numbers = #tpu.dot_dimension_numbers<[1], [0], [0], [1], [0, 0, 1, 1], [], []>} : vector<16x64xbf16>, vector<64x5xbf16>, vector<16x5xf32> -> vector<16x5xf32>
    %c0_31 = arith.constant 0 : index
    %c0_32 = arith.constant 0 : index
    %40 = vector.load %arg9[%c0_31, %c0_32] : memref<256x5xbf16, #tpu.memory_space<vmem>>, vector<256x5xbf16>
    %cst_33 = arith.constant dense<0.000000e+00> : vector<16x5xf32>
    %41 = tpu.matmul %12, %40, %cst_33 {dimension_numbers = #tpu.dot_dimension_numbers<[1], [0], [0], [1], [0, 0, 1, 1], [], []>} : vector<16x256xbf16>, vector<256x5xbf16>, vector<16x5xf32> -> vector<16x5xf32>
    %42 = arith.addf %39, %41 : vector<16x5xf32>
    %c0_34 = arith.constant 0 : index
    %c0_35 = arith.constant 0 : index
    %43 = vector.load %arg10[%c0_34, %c0_35] : memref<1x5xf32, #tpu.memory_space<vmem>>, vector<1x5xf32>
    %44 = vector.broadcast %43 : vector<1x5xf32> to vector<16x5xf32>
    %45 = arith.addf %42, %44 : vector<16x5xf32>
    %cst_36 = arith.constant 0.000000e+00 : f32
    %46 = vector.broadcast %cst_36 : f32 to vector<16x5xf32>
    %47 = arith.maximumf %45, %46 : vector<16x5xf32>
    %48 = vector.extract_strided_slice %47 {offsets = [0, 0], sizes = [8, 5], strides = [1, 1]} : vector<16x5xf32> to vector<8x5xf32>
    %49 = vector.extract_strided_slice %48 {offsets = [0, 0], sizes = [8, 1], strides = [1, 1]} : vector<8x5xf32> to vector<8x1xf32>
    %c0_37 = arith.constant 0 : index
    %c0_38 = arith.constant 0 : index
    %c0_39 = arith.constant 0 : index
    %50 = vector.load %arg11[%c0_37, %c0_38, %c0_39] : memref<5x8x256xf32, #tpu.memory_space<vmem>>, vector<1x8x256xf32>
    %51 = vector.shape_cast %50 : vector<1x8x256xf32> to vector<8x256xf32>
    %52 = vector.broadcast %49 : vector<8x1xf32> to vector<8x256xf32>
    %53 = arith.mulf %52, %51 : vector<8x256xf32>
    %54 = vector.extract_strided_slice %48 {offsets = [0, 1], sizes = [8, 1], strides = [1, 1]} : vector<8x5xf32> to vector<8x1xf32>
    %c1_40 = arith.constant 1 : index
    %c0_41 = arith.constant 0 : index
    %c0_42 = arith.constant 0 : index
    %55 = vector.load %arg11[%c1_40, %c0_41, %c0_42] : memref<5x8x256xf32, #tpu.memory_space<vmem>>, vector<1x8x256xf32>
    %56 = vector.shape_cast %55 : vector<1x8x256xf32> to vector<8x256xf32>
    %57 = vector.broadcast %54 : vector<8x1xf32> to vector<8x256xf32>
    %58 = arith.mulf %57, %56 : vector<8x256xf32>
    %59 = arith.addf %53, %58 : vector<8x256xf32>
    %60 = vector.extract_strided_slice %48 {offsets = [0, 2], sizes = [8, 1], strides = [1, 1]} : vector<8x5xf32> to vector<8x1xf32>
    %c2 = arith.constant 2 : index
    %c0_43 = arith.constant 0 : index
    %c0_44 = arith.constant 0 : index
    %61 = vector.load %arg11[%c2, %c0_43, %c0_44] : memref<5x8x256xf32, #tpu.memory_space<vmem>>, vector<1x8x256xf32>
    %62 = vector.shape_cast %61 : vector<1x8x256xf32> to vector<8x256xf32>
    %63 = vector.broadcast %60 : vector<8x1xf32> to vector<8x256xf32>
    %64 = arith.mulf %63, %62 : vector<8x256xf32>
    %65 = arith.addf %59, %64 : vector<8x256xf32>
    %66 = vector.extract_strided_slice %48 {offsets = [0, 3], sizes = [8, 1], strides = [1, 1]} : vector<8x5xf32> to vector<8x1xf32>
    %c3 = arith.constant 3 : index
    %c0_45 = arith.constant 0 : index
    %c0_46 = arith.constant 0 : index
    %67 = vector.load %arg11[%c3, %c0_45, %c0_46] : memref<5x8x256xf32, #tpu.memory_space<vmem>>, vector<1x8x256xf32>
    %68 = vector.shape_cast %67 : vector<1x8x256xf32> to vector<8x256xf32>
    %69 = vector.broadcast %66 : vector<8x1xf32> to vector<8x256xf32>
    %70 = arith.mulf %69, %68 : vector<8x256xf32>
    %71 = arith.addf %65, %70 : vector<8x256xf32>
    %72 = vector.extract_strided_slice %48 {offsets = [0, 4], sizes = [8, 1], strides = [1, 1]} : vector<8x5xf32> to vector<8x1xf32>
    %c4 = arith.constant 4 : index
    %c0_47 = arith.constant 0 : index
    %c0_48 = arith.constant 0 : index
    %73 = vector.load %arg11[%c4, %c0_47, %c0_48] : memref<5x8x256xf32, #tpu.memory_space<vmem>>, vector<1x8x256xf32>
    %74 = vector.shape_cast %73 : vector<1x8x256xf32> to vector<8x256xf32>
    %75 = vector.broadcast %72 : vector<8x1xf32> to vector<8x256xf32>
    %76 = arith.mulf %75, %74 : vector<8x256xf32>
    %77 = arith.addf %71, %76 : vector<8x256xf32>
    %cst_49 = arith.constant dense<0.000000e+00> : vector<256xf32>
    %78 = vector.multi_reduction <add>, %77, %cst_49 [0] : vector<8x256xf32> to vector<256xf32>
    %c0_50 = arith.constant 0 : index
    %c0_51 = arith.constant 0 : index
    %c0_52 = arith.constant 0 : index
    %79 = vector.load %arg12[%c0_50, %c0_51, %c0_52] : memref<1x2x256xf32, #tpu.memory_space<vmem>>, vector<1x1x256xf32>
    %80 = vector.shape_cast %79 : vector<1x1x256xf32> to vector<256xf32>
    %81 = vector.shape_cast %78 : vector<256xf32> to vector<1x1x256xf32>
    tpu.vector_store %arg12[%c0_50, %c0_51, %c0_52], %81 {strides = array<i32>} : memref<1x2x256xf32, #tpu.memory_space<vmem>>, vector<1x1x256xf32>,
    %82 = vector.extract_strided_slice %47 {offsets = [8, 0], sizes = [8, 5], strides = [1, 1]} : vector<16x5xf32> to vector<8x5xf32>
    %83 = vector.extract_strided_slice %82 {offsets = [0, 0], sizes = [8, 1], strides = [1, 1]} : vector<8x5xf32> to vector<8x1xf32>
    %c0_53 = arith.constant 0 : index
    %c0_54 = arith.constant 0 : index
    %c0_55 = arith.constant 0 : index
    %84 = vector.load %arg11[%c0_53, %c0_54, %c0_55] : memref<5x8x256xf32, #tpu.memory_space<vmem>>, vector<1x8x256xf32>
    %85 = vector.shape_cast %84 : vector<1x8x256xf32> to vector<8x256xf32>
    %86 = vector.broadcast %83 : vector<8x1xf32> to vector<8x256xf32>
    %87 = arith.mulf %86, %85 : vector<8x256xf32>
    %88 = vector.extract_strided_slice %82 {offsets = [0, 1], sizes = [8, 1], strides = [1, 1]} : vector<8x5xf32> to vector<8x1xf32>
    %c1_56 = arith.constant 1 : index
    %c0_57 = arith.constant 0 : index
    %c0_58 = arith.constant 0 : index
    %89 = vector.load %arg11[%c1_56, %c0_57, %c0_58] : memref<5x8x256xf32, #tpu.memory_space<vmem>>, vector<1x8x256xf32>
    %90 = vector.shape_cast %89 : vector<1x8x256xf32> to vector<8x256xf32>
    %91 = vector.broadcast %88 : vector<8x1xf32> to vector<8x256xf32>
    %92 = arith.mulf %91, %90 : vector<8x256xf32>
    %93 = arith.addf %87, %92 : vector<8x256xf32>
    %94 = vector.extract_strided_slice %82 {offsets = [0, 2], sizes = [8, 1], strides = [1, 1]} : vector<8x5xf32> to vector<8x1xf32>
    %c2_59 = arith.constant 2 : index
    %c0_60 = arith.constant 0 : index
    %c0_61 = arith.constant 0 : index
    %95 = vector.load %arg11[%c2_59, %c0_60, %c0_61] : memref<5x8x256xf32, #tpu.memory_space<vmem>>, vector<1x8x256xf32>
    %96 = vector.shape_cast %95 : vector<1x8x256xf32> to vector<8x256xf32>
    %97 = vector.broadcast %94 : vector<8x1xf32> to vector<8x256xf32>
    %98 = arith.mulf %97, %96 : vector<8x256xf32>
    %99 = arith.addf %93, %98 : vector<8x256xf32>
    %100 = vector.extract_strided_slice %82 {offsets = [0, 3], sizes = [8, 1], strides = [1, 1]} : vector<8x5xf32> to vector<8x1xf32>
    %c3_62 = arith.constant 3 : index
    %c0_63 = arith.constant 0 : index
    %c0_64 = arith.constant 0 : index
    %101 = vector.load %arg11[%c3_62, %c0_63, %c0_64] : memref<5x8x256xf32, #tpu.memory_space<vmem>>, vector<1x8x256xf32>
    %102 = vector.shape_cast %101 : vector<1x8x256xf32> to vector<8x256xf32>
    %103 = vector.broadcast %100 : vector<8x1xf32> to vector<8x256xf32>
    %104 = arith.mulf %103, %102 : vector<8x256xf32>
    %105 = arith.addf %99, %104 : vector<8x256xf32>
    %106 = vector.extract_strided_slice %82 {offsets = [0, 4], sizes = [8, 1], strides = [1, 1]} : vector<8x5xf32> to vector<8x1xf32>
    %c4_65 = arith.constant 4 : index
    %c0_66 = arith.constant 0 : index
    %c0_67 = arith.constant 0 : index
    %107 = vector.load %arg11[%c4_65, %c0_66, %c0_67] : memref<5x8x256xf32, #tpu.memory_space<vmem>>, vector<1x8x256xf32>
    %108 = vector.shape_cast %107 : vector<1x8x256xf32> to vector<8x256xf32>
    %109 = vector.broadcast %106 : vector<8x1xf32> to vector<8x256xf32>
    %110 = arith.mulf %109, %108 : vector<8x256xf32>
    %111 = arith.addf %105, %110 : vector<8x256xf32>
    %cst_68 = arith.constant dense<0.000000e+00> : vector<256xf32>
    %112 = vector.multi_reduction <add>, %111, %cst_68 [0] : vector<8x256xf32> to vector<256xf32>
    %c0_69 = arith.constant 0 : index
    %c1_70 = arith.constant 1 : index
    %c0_71 = arith.constant 0 : index
    %113 = vector.load %arg12[%c0_69, %c1_70, %c0_71] : memref<1x2x256xf32, #tpu.memory_space<vmem>>, vector<1x1x256xf32>
    %114 = vector.shape_cast %113 : vector<1x1x256xf32> to vector<256xf32>
    %115 = vector.shape_cast %112 : vector<256xf32> to vector<1x1x256xf32>
    tpu.vector_store %arg12[%c0_69, %c1_70, %c0_71], %115 {strides = array<i32>} : memref<1x2x256xf32, #tpu.memory_space<vmem>>, vector<1x1x256xf32>,
    return
  }
  func.func @transform_0(%arg0: i32) -> (i32, i32, i32) {
    %c0_i32 = arith.constant 0 : i32
    %c0_i32_0 = arith.constant 0 : i32
    %c0_i32_1 = arith.constant 0 : i32
    return %c0_i32, %arg0, %c0_i32_0 : i32, i32, i32
  }
  func.func @transform_1(%arg0: i32) -> (i32, i32, i32) {
    %c0_i32 = arith.constant 0 : i32
    %c0_i32_0 = arith.constant 0 : i32
    %c0_i32_1 = arith.constant 0 : i32
    %c0_i32_2 = arith.constant 0 : i32
    return %c0_i32, %c0_i32_0, %c0_i32_1 : i32, i32, i32
  }
  func.func @transform_2(%arg0: i32) -> (i32, i32) {
    %c0_i32 = arith.constant 0 : i32
    %c0_i32_0 = arith.constant 0 : i32
    %c0_i32_1 = arith.constant 0 : i32
    return %c0_i32, %c0_i32_0 : i32, i32
  }
  func.func @transform_3(%arg0: i32) -> (i32, i32) {
    %c0_i32 = arith.constant 0 : i32
    %c0_i32_0 = arith.constant 0 : i32
    %c0_i32_1 = arith.constant 0 : i32
    return %c0_i32, %c0_i32_0 : i32, i32
  }
  func.func @transform_4(%arg0: i32) -> (i32, i32) {
    %c0_i32 = arith.constant 0 : i32
    %c0_i32_0 = arith.constant 0 : i32
    %c0_i32_1 = arith.constant 0 : i32
    return %c0_i32, %c0_i32_0 : i32, i32
  }
  func.func @transform_5(%arg0: i32) -> (i32, i32) {
    %c0_i32 = arith.constant 0 : i32
    %c0_i32_0 = arith.constant 0 : i32
    %c0_i32_1 = arith.constant 0 : i32
    return %c0_i32, %c0_i32_0 : i32, i32
  }
  func.func @transform_6(%arg0: i32) -> (i32, i32) {
    %c0_i32 = arith.constant 0 : i32
    %c0_i32_0 = arith.constant 0 : i32
    %c0_i32_1 = arith.constant 0 : i32
    return %c0_i32, %c0_i32_0 : i32, i32
  }
  func.func @transform_7(%arg0: i32) -> (i32, i32) {
    %c0_i32 = arith.constant 0 : i32
    %c0_i32_0 = arith.constant 0 : i32
    %c0_i32_1 = arith.constant 0 : i32
    return %c0_i32, %c0_i32_0 : i32, i32
  }
  func.func @transform_8(%arg0: i32) -> (i32, i32) {
    %c0_i32 = arith.constant 0 : i32
    %c0_i32_0 = arith.constant 0 : i32
    %c0_i32_1 = arith.constant 0 : i32
    return %c0_i32, %c0_i32_0 : i32, i32
  }
  func.func @transform_9(%arg0: i32) -> (i32, i32) {
    %c0_i32 = arith.constant 0 : i32
    %c0_i32_0 = arith.constant 0 : i32
    %c0_i32_1 = arith.constant 0 : i32
    return %c0_i32, %c0_i32_0 : i32, i32
  }
  func.func @transform_10(%arg0: i32) -> (i32, i32, i32) {
    %c0_i32 = arith.constant 0 : i32
    %c0_i32_0 = arith.constant 0 : i32
    %c0_i32_1 = arith.constant 0 : i32
    return %c0_i32, %arg0, %c0_i32_0 : i32, i32, i32
  }
  func.func @transform_11(%arg0: i32) -> (i32, i32, i32) {
    %c0_i32 = arith.constant 0 : i32
    %c0_i32_0 = arith.constant 0 : i32
    %c0_i32_1 = arith.constant 0 : i32
    return %arg0, %c0_i32, %c0_i32_0 : i32, i32, i32
  }
}

</mosaic_0001>

<llo_original>
// kernel: tpu_custom_call.1
$region0: #{tpu_custom_call.1}
  #allocation0 [shape = 'u32[]', space=smem, size = 0x4, offset = 0x4, fixed_abs, tag = 'smem constant byte address 0x4 - core index']
  #allocation1 [shape = 'u32[72,128]{1,0:T(1,128)}', space=vmem, size = 0x9000, scoped, tag = 'internal scratch']
  %s0 = inlined_call_operand.vmem [shape: bf16[2,8,64], index: 0, kind: input, shape index: {}]
  %s1 = inlined_call_operand.vmem [shape: bf16[2,64,256], index: 1, kind: input, shape index: {}]
  %s2 = inlined_call_operand.vmem [shape: bf16[256,128], index: 2, kind: input, shape index: {}]
  %s3 = inlined_call_operand.vmem [shape: f32[1,128], index: 3, kind: input, shape index: {}]
  %s4 = inlined_call_operand.vmem [shape: bf16[128,64], index: 4, kind: input, shape index: {}]
  %s5 = inlined_call_operand.vmem [shape: bf16[256,64], index: 5, kind: input, shape index: {}]
  %s6 = inlined_call_operand.vmem [shape: f32[1,64], index: 6, kind: input, shape index: {}]
  %s7 = inlined_call_operand.vmem [shape: bf16[64,5], index: 7, kind: input, shape index: {}]
  %s8 = inlined_call_operand.vmem [shape: bf16[256,5], index: 8, kind: input, shape index: {}]
  %s9 = inlined_call_operand.vmem [shape: f32[1,5], index: 9, kind: input, shape index: {}]
  %s10 = inlined_call_operand.vmem [shape: f32[5,8,256], index: 10, kind: input, shape index: {}]
  %s11 = inlined_call_operand.hbm [shape: f32[1,2,256], index: 11, kind: output, shape index: {}]
  %s12 = sld [smem:[#allocation0]]
  $region54: #{tpu_custom_call.1} parent=0
    _
  %s14 = ssub.s32 1, %s12
  %s15 = scalar_select 0, %s14, %s12
  $region1: #{tpu_custom_call.1} parent=0
    #allocation2 [shape = 'u8[2048]{0}', space=vmem, size = 0x800, scoped, tag = 'output window, operand 0, single buffered']
    #allocation3 [shape = 's32[1]{0}', space=sflag, size = 0x4, scoped, tag = 'scoped memory for tpu_custom_call.1']
    %16 = vsyncpa [#allocation3], 0
    // Predicated region
    $region2: #{tpu_custom_call.1} parent=1 // pred_check
      _
    $region3: #{tpu_custom_call.1} parent=1 // pred_check_branch
      %18 = sbr.rel (0) target = $region5
    $region4: #{tpu_custom_call.1} parent=1 // pred_region
      _
    $region5: #{tpu_custom_call.1} parent=1 // pred_fallthru
      _
    // Predicated region
    $region6: #{tpu_custom_call.1} parent=1 // pred_check
      _
    $region7: #{tpu_custom_call.1} parent=1 // pred_check_branch
      %20 = sbr.rel (0) target = $region9
    $region8: #{tpu_custom_call.1} parent=1 // pred_region
      _
    $region9: #{tpu_custom_call.1} parent=1 // pred_fallthru
      _
    // Predicated region
    $region10: #{tpu_custom_call.1} parent=1 // pred_check
      _
    $region11: #{tpu_custom_call.1} parent=1 // pred_check_branch
      %22 = sbr.rel (0) target = $region13
    $region12: #{tpu_custom_call.1} parent=1 // pred_region
      _
    $region13: #{tpu_custom_call.1} parent=1 // pred_fallthru
      _
    // Predicated region
    $region14: #{tpu_custom_call.1} parent=1 // pred_check
      _
    $region15: #{tpu_custom_call.1} parent=1 // pred_check_branch
      %24 = sbr.rel (0) target = $region17
    $region16: #{tpu_custom_call.1} parent=1 // pred_region
      _
    $region17: #{tpu_custom_call.1} parent=1 // pred_fallthru
      _
    // Predicated region
    $region18: #{tpu_custom_call.1} parent=1 // pred_check
      _
    $region19: #{tpu_custom_call.1} parent=1 // pred_check_branch
      %26 = sbr.rel (0) target = $region21
    $region20: #{tpu_custom_call.1} parent=1 // pred_region
      _
    $region21: #{tpu_custom_call.1} parent=1 // pred_fallthru
      _
    // Predicated region
    $region22: #{tpu_custom_call.1} parent=1 // pred_check
      _
    $region23: #{tpu_custom_call.1} parent=1 // pred_check_branch
      %28 = sbr.rel (0) target = $region25
    $region24: #{tpu_custom_call.1} parent=1 // pred_region
      _
    $region25: #{tpu_custom_call.1} parent=1 // pred_fallthru
      _
    // Predicated region
    $region26: #{tpu_custom_call.1} parent=1 // pred_check
      _
    $region27: #{tpu_custom_call.1} parent=1 // pred_check_branch
      %30 = sbr.rel (0) target = $region29
    $region28: #{tpu_custom_call.1} parent=1 // pred_region
      _
    $region29: #{tpu_custom_call.1} parent=1 // pred_fallthru
      _
    // Predicated region
    $region30: #{tpu_custom_call.1} parent=1 // pred_check
      _
    $region31: #{tpu_custom_call.1} parent=1 // pred_check_branch
      %32 = sbr.rel (0) target = $region33
    $region32: #{tpu_custom_call.1} parent=1 // pred_region
      _
    $region33: #{tpu_custom_call.1} parent=1 // pred_fallthru
      _
    // Predicated region
    $region34: #{tpu_custom_call.1} parent=1 // pred_check
      _
    $region35: #{tpu_custom_call.1} parent=1 // pred_check_branch
      %34 = sbr.rel (0) target = $region37
    $region36: #{tpu_custom_call.1} parent=1 // pred_region
      _
    $region37: #{tpu_custom_call.1} parent=1 // pred_fallthru
      _
    // Predicated region
    $region38: #{tpu_custom_call.1} parent=1 // pred_check
      _
    $region39: #{tpu_custom_call.1} parent=1 // pred_check_branch
      %36 = sbr.rel (0) target = $region41
    $region40: #{tpu_custom_call.1} parent=1 // pred_region
      _
    $region41: #{tpu_custom_call.1} parent=1 // pred_fallthru
      _
    // Predicated region
    $region42: #{tpu_custom_call.1} parent=1 // pred_check
      _
    $region43: #{tpu_custom_call.1} parent=1 // pred_check_branch
      %38 = sbr.rel (0) target = $region45
    $region44: #{tpu_custom_call.1} parent=1 // pred_region
      _
    $region45: #{tpu_custom_call.1} parent=1 // pred_fallthru
      _
    %v40 = vld [vmem:[%s0] sm:$0xf]
    %v41 = vld [vmem:[%s1] sm:$0xff]
    %v42 = vld [vmem:[%s1 + $0x8] sm:$0xff]
    %v43 = vld [vmem:[%s1 + $0x10] sm:$0xff]
    %v44 = vld [vmem:[%s1 + $0x18] sm:$0xff]
    %v45 = vld [vmem:[%s1 + $0x20] sm:$0xff]
    %v46 = vld [vmem:[%s1 + $0x28] sm:$0xff]
    %v47 = vld [vmem:[%s1 + $0x30] sm:$0xff]
    %v48 = vld [vmem:[%s1 + $0x38] sm:$0xff]
    %v57 = vunpack.c.l.b16 %v41
    %v58 = vunpack.c.h.b16 %v41
    %v59 = vunpack.c.l.b16 %v42
    %v60 = vunpack.c.h.b16 %v42
    %v61 = vunpack.c.l.b16 %v43
    %v62 = vunpack.c.h.b16 %v43
    %v63 = vunpack.c.l.b16 %v44
    %v64 = vunpack.c.h.b16 %v44
    %v65 = vunpack.c.l.b16 %v45
    %v66 = vunpack.c.h.b16 %v45
    %v67 = vunpack.c.l.b16 %v46
    %v68 = vunpack.c.h.b16 %v46
    %v69 = vunpack.c.l.b16 %v47
    %v70 = vunpack.c.h.b16 %v47
    %v71 = vunpack.c.l.b16 %v48
    %v72 = vunpack.c.h.b16 %v48
    %v73 = vpack.c.b16 %v59, %v57
    %v74 = vpack.c.b16 %v60, %v58
    %v75 = vpack.c.b16 %v63, %v61
    %v76 = vpack.c.b16 %v64, %v62
    %v77 = vpack.c.b16 %v67, %v65
    %v78 = vpack.c.b16 %v68, %v66
    %v79 = vpack.c.b16 %v71, %v69
    %v80 = vpack.c.b16 %v72, %v70
    %vm89 = vcmask 523264
    %v91 = vsel %vm89, %v40, 0
    %93 = vmatpush.bf16.msra.mxu0 0
    %94 = vmatpush.bf16.msra.mxu0 0
    %95 = vmatpush.bf16.msra.mxu0 0
    %96 = vmatpush.bf16.msra.mxu0 0
    %97 = vmatpush.bf16.msra.mxu0 %v79
    %98 = vmatpush.bf16.msra.mxu0 %v77
    %99 = vmatpush.bf16.msra.mxu0 %v75
    %100 = vmatpush.bf16.msra.mxu0 %v73
    %101 = vmatmul.bf16.gmra.mxu0 %v91
    %v102 = vpop.f32.mrf.mxu0
    %v103 = vadd.f32 0.0, %v102
    %v104 = vpop.f32.mrf.mxu0
    %105 = vdwg.mxu0
    %106 = vmatpush.bf16.msra.mxu0 0
    %107 = vmatpush.bf16.msra.mxu0 0
    %108 = vmatpush.bf16.msra.mxu0 0
    %109 = vmatpush.bf16.msra.mxu0 0
    %110 = vmatpush.bf16.msra.mxu0 %v80
    %111 = vmatpush.bf16.msra.mxu0 %v78
    %112 = vmatpush.bf16.msra.mxu0 %v76
    %113 = vmatpush.bf16.msra.mxu0 %v74
    %114 = vmatmul.bf16.gmra.mxu0 %v91
    %v115 = vpop.f32.mrf.mxu0
    %v116 = vadd.f32 0.0, %v115
    %v117 = vpop.f32.mrf.mxu0
    %118 = vdwg.mxu0
    %v119 = vpack.c.bf16 %v116, %v103
    %s120 = scalar_lea.vmem %s0, 4
    %v121 = vld [vmem:[%s120] sm:$0xf]
    %s122 = scalar_lea.vmem %s1, 64
    %v123 = vld [vmem:[%s122] sm:$0xff]
    %v124 = vld [vmem:[%s122 + $0x8] sm:$0xff]
    %v125 = vld [vmem:[%s122 + $0x10] sm:$0xff]
    %v126 = vld [vmem:[%s122 + $0x18] sm:$0xff]
    %v127 = vld [vmem:[%s122 + $0x20] sm:$0xff]
    %v128 = vld [vmem:[%s122 + $0x28] sm:$0xff]
    %v129 = vld [vmem:[%s122 + $0x30] sm:$0xff]
    %v130 = vld [vmem:[%s122 + $0x38] sm:$0xff]
    %v139 = vunpack.c.l.b16 %v123
    %v140 = vunpack.c.h.b16 %v123
    %v141 = vunpack.c.l.b16 %v124
    %v142 = vunpack.c.h.b16 %v124
    %v143 = vunpack.c.l.b16 %v125
    %v144 = vunpack.c.h.b16 %v125
    %v145 = vunpack.c.l.b16 %v126
    %v146 = vunpack.c.h.b16 %v126
    %v147 = vunpack.c.l.b16 %v127
    %v148 = vunpack.c.h.b16 %v127
    %v149 = vunpack.c.l.b16 %v128
    %v150 = vunpack.c.h.b16 %v128
    %v151 = vunpack.c.l.b16 %v129
    %v152 = vunpack.c.h.b16 %v129
    %v153 = vunpack.c.l.b16 %v130
    %v154 = vunpack.c.h.b16 %v130
    %v155 = vpack.c.b16 %v141, %v139
    %v156 = vpack.c.b16 %v142, %v140
    %v157 = vpack.c.b16 %v145, %v143
    %v158 = vpack.c.b16 %v146, %v144
    %v159 = vpack.c.b16 %v149, %v147
    %v160 = vpack.c.b16 %v150, %v148
    %v161 = vpack.c.b16 %v153, %v151
    %v162 = vpack.c.b16 %v154, %v152
    %v172 = vsel %vm89, %v121, 0
    %174 = vmatpush.bf16.msra.mxu0 0
    %175 = vmatpush.bf16.msra.mxu0 0
    %176 = vmatpush.bf16.msra.mxu0 0
    %177 = vmatpush.bf16.msra.mxu0 0
    %178 = vmatpush.bf16.msra.mxu0 %v161
    %179 = vmatpush.bf16.msra.mxu0 %v159
    %180 = vmatpush.bf16.msra.mxu0 %v157
    %181 = vmatpush.bf16.msra.mxu0 %v155
    %182 = vmatmul.bf16.gmra.mxu0 %v172
    %v183 = vpop.f32.mrf.mxu0
    %v184 = vadd.f32 0.0, %v183
    %v185 = vpop.f32.mrf.mxu0
    %186 = vdwg.mxu0
    %187 = vmatpush.bf16.msra.mxu0 0
    %188 = vmatpush.bf16.msra.mxu0 0
    %189 = vmatpush.bf16.msra.mxu0 0
    %190 = vmatpush.bf16.msra.mxu0 0
    %191 = vmatpush.bf16.msra.mxu0 %v162
    %192 = vmatpush.bf16.msra.mxu0 %v160
    %193 = vmatpush.bf16.msra.mxu0 %v158
    %194 = vmatpush.bf16.msra.mxu0 %v156
    %195 = vmatmul.bf16.gmra.mxu0 %v172
    %v196 = vpop.f32.mrf.mxu0
    %v197 = vadd.f32 0.0, %v196
    %v198 = vpop.f32.mrf.mxu0
    %199 = vdwg.mxu0
    %v200 = vpack.c.bf16 %v197, %v184
    %v202 = vunpack.c.l.b16 %v119
    %v203 = vunpack.c.h.b16 %v119
    %v204 = vpack.c.b16 %v202, %v202
    %v205 = vpack.c.b16 %v203, %v203
    %v207 = vunpack.c.l.b16 %v200
    %v208 = vunpack.c.h.b16 %v200
    %v209 = vpack.c.b16 %v207, %v207
    %v210 = vpack.c.b16 %v208, %v208
    %vm211 = vcmask 1043456
    %v214 = vsel %vm211, %v204, %v209
    %v218 = vsel %vm211, %v205, %v210
    %v220 = vld [vmem:[%s2] sm:$0xf]
    %v221 = vld [vmem:[%s2 + $0x4] sm:$0xf]
    %v222 = vld [vmem:[%s2 + $0x8] sm:$0xf]
    %v223 = vld [vmem:[%s2 + $0xc] sm:$0xf]
    %v224 = vld [vmem:[%s2 + $0x10] sm:$0xf]
    %v225 = vld [vmem:[%s2 + $0x14] sm:$0xf]
    %v226 = vld [vmem:[%s2 + $0x18] sm:$0xf]
    %v227 = vld [vmem:[%s2 + $0x1c] sm:$0xf]
    %v228 = vld [vmem:[%s2 + $0x20] sm:$0xf]
    %v229 = vld [vmem:[%s2 + $0x24] sm:$0xf]
    %v230 = vld [vmem:[%s2 + $0x28] sm:$0xf]
    %v231 = vld [vmem:[%s2 + $0x2c] sm:$0xf]
    %v232 = vld [vmem:[%s2 + $0x30] sm:$0xf]
    %v233 = vld [vmem:[%s2 + $0x34] sm:$0xf]
    %v234 = vld [vmem:[%s2 + $0x38] sm:$0xf]
    %v235 = vld [vmem:[%s2 + $0x3c] sm:$0xf]
    %v236 = vld [vmem:[%s2 + $0x40] sm:$0xf]
    %v237 = vld [vmem:[%s2 + $0x44] sm:$0xf]
    %v238 = vld [vmem:[%s2 + $0x48] sm:$0xf]
    %v239 = vld [vmem:[%s2 + $0x4c] sm:$0xf]
    %v240 = vld [vmem:[%s2 + $0x50] sm:$0xf]
    %v241 = vld [vmem:[%s2 + $0x54] sm:$0xf]
    %v242 = vld [vmem:[%s2 + $0x58] sm:$0xf]
    %v243 = vld [vmem:[%s2 + $0x5c] sm:$0xf]
    %v244 = vld [vmem:[%s2 + $0x60] sm:$0xf]
    %v245 = vld [vmem:[%s2 + $0x64] sm:$0xf]
    %v246 = vld [vmem:[%s2 + $0x68] sm:$0xf]
    %v247 = vld [vmem:[%s2 + $0x6c] sm:$0xf]
    %v248 = vld [vmem:[%s2 + $0x70] sm:$0xf]
    %v249 = vld [vmem:[%s2 + $0x74] sm:$0xf]
    %v250 = vld [vmem:[%s2 + $0x78] sm:$0xf]
    %v251 = vld [vmem:[%s2 + $0x7c] sm:$0xf]
    %v252 = vld [vmem:[%s3] sm:$0x1]
    %v254 = vperm.slane %v252, 0
    %v288 = vunpack.c.l.b16 %v220
    %v289 = vunpack.c.l.b16 %v221
    %v290 = vunpack.c.l.b16 %v222
    %v291 = vunpack.c.l.b16 %v223
    %v292 = vunpack.c.l.b16 %v224
    %v293 = vunpack.c.l.b16 %v225
    %v294 = vunpack.c.l.b16 %v226
    %v295 = vunpack.c.l.b16 %v227
    %v296 = vunpack.c.l.b16 %v228
    %v297 = vunpack.c.l.b16 %v229
    %v298 = vunpack.c.l.b16 %v230
    %v299 = vunpack.c.l.b16 %v231
    %v300 = vunpack.c.l.b16 %v232
    %v301 = vunpack.c.l.b16 %v233
    %v302 = vunpack.c.l.b16 %v234
    %v303 = vunpack.c.l.b16 %v235
    %v304 = vunpack.c.l.b16 %v236
    %v305 = vunpack.c.l.b16 %v237
    %v306 = vunpack.c.l.b16 %v238
    %v307 = vunpack.c.l.b16 %v239
    %v308 = vunpack.c.l.b16 %v240
    %v309 = vunpack.c.l.b16 %v241
    %v310 = vunpack.c.l.b16 %v242
    %v311 = vunpack.c.l.b16 %v243
    %v312 = vunpack.c.l.b16 %v244
    %v313 = vunpack.c.l.b16 %v245
    %v314 = vunpack.c.l.b16 %v246
    %v315 = vunpack.c.l.b16 %v247
    %v316 = vunpack.c.l.b16 %v248
    %v317 = vunpack.c.l.b16 %v249
    %v318 = vunpack.c.l.b16 %v250
    %v319 = vunpack.c.l.b16 %v251
    %v320 = vpack.c.b16 %v289, %v288
    %v321 = vpack.c.b16 %v291, %v290
    %v322 = vpack.c.b16 %v293, %v292
    %v323 = vpack.c.b16 %v295, %v294
    %v324 = vpack.c.b16 %v297, %v296
    %v325 = vpack.c.b16 %v299, %v298
    %v326 = vpack.c.b16 %v301, %v300
    %v327 = vpack.c.b16 %v303, %v302
    %v328 = vpack.c.b16 %v305, %v304
    %v329 = vpack.c.b16 %v307, %v306
    %v330 = vpack.c.b16 %v309, %v308
    %v331 = vpack.c.b16 %v311, %v310
    %v332 = vpack.c.b16 %v313, %v312
    %v333 = vpack.c.b16 %v315, %v314
    %v334 = vpack.c.b16 %v317, %v316
    %v335 = vpack.c.b16 %v319, %v318
    %352 = vmatpush.bf16.msra.mxu0 %v327
    %353 = vmatpush.bf16.msra.mxu0 %v326
    %354 = vmatpush.bf16.msra.mxu0 %v325
    %355 = vmatpush.bf16.msra.mxu0 %v324
    %356 = vmatpush.bf16.msra.mxu0 %v323
    %357 = vmatpush.bf16.msra.mxu0 %v322
    %358 = vmatpush.bf16.msra.mxu0 %v321
    %359 = vmatpush.bf16.msra.mxu0 %v320
    %360 = vmatmul.bf16.gmra.mxu0 %v214
    %v361 = vpop.f32.mrf.mxu0
    %v362 = vadd.f32 %v254, %v361
    %v363 = vpop.f32.mrf.mxu0
    %v364 = vadd.f32 %v254, %v363
    %365 = vdwg.mxu0
    %366 = vmatpush.bf16.msra.mxu0 %v335
    %367 = vmatpush.bf16.msra.mxu0 %v334
    %368 = vmatpush.bf16.msra.mxu0 %v333
    %369 = vmatpush.bf16.msra.mxu0 %v332
    %370 = vmatpush.bf16.msra.mxu0 %v331
    %371 = vmatpush.bf16.msra.mxu0 %v330
    %372 = vmatpush.bf16.msra.mxu0 %v329
    %373 = vmatpush.bf16.msra.mxu0 %v328
    %374 = vmatmul.bf16.gmra.mxu0 %v218
    %v375 = vpop.f32.mrf.mxu0
    %v376 = vadd.f32 %v362, %v375
    %v377 = vpop.f32.mrf.mxu0
    %v378 = vadd.f32 %v364, %v377
    %379 = vdwg.mxu0
    %vm380 = vcmp.gt.f32.partialorder %v376, 0.0
    %vm381 = vcmp.gt.f32.partialorder %v378, 0.0
    %v382 = vmul.f32 %v376, 0.01
    %v383 = vmul.f32 %v378, 0.01
    %v384 = vsel %vm380, %v376, %v382
    %v385 = vsel %vm381, %v378, %v383
    %v386 = vpack.c.bf16 %v385, %v384
    %v387 = vld [vmem:[%s4] sm:$0xf]
    %v388 = vld [vmem:[%s4 + $0x4] sm:$0xf]
    %v389 = vld [vmem:[%s4 + $0x8] sm:$0xf]
    %v390 = vld [vmem:[%s4 + $0xc] sm:$0xf]
    %v391 = vld [vmem:[%s4 + $0x10] sm:$0xf]
    %v392 = vld [vmem:[%s4 + $0x14] sm:$0xf]
    %v393 = vld [vmem:[%s4 + $0x18] sm:$0xf]
    %v394 = vld [vmem:[%s4 + $0x1c] sm:$0xf]
    %v395 = vld [vmem:[%s4 + $0x20] sm:$0xf]
    %v396 = vld [vmem:[%s4 + $0x24] sm:$0xf]
    %v397 = vld [vmem:[%s4 + $0x28] sm:$0xf]
    %v398 = vld [vmem:[%s4 + $0x2c] sm:$0xf]
    %v399 = vld [vmem:[%s4 + $0x30] sm:$0xf]
    %v400 = vld [vmem:[%s4 + $0x34] sm:$0xf]
    %v401 = vld [vmem:[%s4 + $0x38] sm:$0xf]
    %v402 = vld [vmem:[%s4 + $0x3c] sm:$0xf]
    %v403 = vld [vmem:[%s5] sm:$0xf]
    %v404 = vld [vmem:[%s5 + $0x4] sm:$0xf]
    %v405 = vld [vmem:[%s5 + $0x8] sm:$0xf]
    %v406 = vld [vmem:[%s5 + $0xc] sm:$0xf]
    %v407 = vld [vmem:[%s5 + $0x10] sm:$0xf]
    %v408 = vld [vmem:[%s5 + $0x14] sm:$0xf]
    %v409 = vld [vmem:[%s5 + $0x18] sm:$0xf]
    %v410 = vld [vmem:[%s5 + $0x1c] sm:$0xf]
    %v411 = vld [vmem:[%s5 + $0x20] sm:$0xf]
    %v412 = vld [vmem:[%s5 + $0x24] sm:$0xf]
    %v413 = vld [vmem:[%s5 + $0x28] sm:$0xf]
    %v414 = vld [vmem:[%s5 + $0x2c] sm:$0xf]
    %v415 = vld [vmem:[%s5 + $0x30] sm:$0xf]
    %v416 = vld [vmem:[%s5 + $0x34] sm:$0xf]
    %v417 = vld [vmem:[%s5 + $0x38] sm:$0xf]
    %v418 = vld [vmem:[%s5 + $0x3c] sm:$0xf]
    %v419 = vld [vmem:[%s5 + $0x40] sm:$0xf]
    %v420 = vld [vmem:[%s5 + $0x44] sm:$0xf]
    %v421 = vld [vmem:[%s5 + $0x48] sm:$0xf]
    %v422 = vld [vmem:[%s5 + $0x4c] sm:$0xf]
    %v423 = vld [vmem:[%s5 + $0x50] sm:$0xf]
    %v424 = vld [vmem:[%s5 + $0x54] sm:$0xf]
    %v425 = vld [vmem:[%s5 + $0x58] sm:$0xf]
    %v426 = vld [vmem:[%s5 + $0x5c] sm:$0xf]
    %v427 = vld [vmem:[%s5 + $0x60] sm:$0xf]
    %v428 = vld [vmem:[%s5 + $0x64] sm:$0xf]
    %v429 = vld [vmem:[%s5 + $0x68] sm:$0xf]
    %v430 = vld [vmem:[%s5 + $0x6c] sm:$0xf]
    %v431 = vld [vmem:[%s5 + $0x70] sm:$0xf]
    %v432 = vld [vmem:[%s5 + $0x74] sm:$0xf]
    %v433 = vld [vmem:[%s5 + $0x78] sm:$0xf]
    %v434 = vld [vmem:[%s5 + $0x7c] sm:$0xf]
    %v467 = vunpack.c.l.b16 %v403
    %v468 = vunpack.c.l.b16 %v404
    %v469 = vunpack.c.l.b16 %v405
    %v470 = vunpack.c.l.b16 %v406
    %v471 = vunpack.c.l.b16 %v407
    %v472 = vunpack.c.l.b16 %v408
    %v473 = vunpack.c.l.b16 %v409
    %v474 = vunpack.c.l.b16 %v410
    %v475 = vunpack.c.l.b16 %v411
    %v476 = vunpack.c.l.b16 %v412
    %v477 = vunpack.c.l.b16 %v413
    %v478 = vunpack.c.l.b16 %v414
    %v479 = vunpack.c.l.b16 %v415
    %v480 = vunpack.c.l.b16 %v416
    %v481 = vunpack.c.l.b16 %v417
    %v482 = vunpack.c.l.b16 %v418
    %v483 = vunpack.c.l.b16 %v419
    %v484 = vunpack.c.l.b16 %v420
    %v485 = vunpack.c.l.b16 %v421
    %v486 = vunpack.c.l.b16 %v422
    %v487 = vunpack.c.l.b16 %v423
    %v488 = vunpack.c.l.b16 %v424
    %v489 = vunpack.c.l.b16 %v425
    %v490 = vunpack.c.l.b16 %v426
    %v491 = vunpack.c.l.b16 %v427
    %v492 = vunpack.c.l.b16 %v428
    %v493 = vunpack.c.l.b16 %v429
    %v494 = vunpack.c.l.b16 %v430
    %v495 = vunpack.c.l.b16 %v431
    %v496 = vunpack.c.l.b16 %v432
    %v497 = vunpack.c.l.b16 %v433
    %v498 = vunpack.c.l.b16 %v434
    %v499 = vpack.c.b16 %v468, %v467
    %v500 = vpack.c.b16 %v470, %v469
    %v501 = vpack.c.b16 %v472, %v471
    %v502 = vpack.c.b16 %v474, %v473
    %v503 = vpack.c.b16 %v476, %v475
    %v504 = vpack.c.b16 %v478, %v477
    %v505 = vpack.c.b16 %v480, %v479
    %v506 = vpack.c.b16 %v482, %v481
    %v507 = vpack.c.b16 %v484, %v483
    %v508 = vpack.c.b16 %v486, %v485
    %v509 = vpack.c.b16 %v488, %v487
    %v510 = vpack.c.b16 %v490, %v489
    %v511 = vpack.c.b16 %v492, %v491
    %v512 = vpack.c.b16 %v494, %v493
    %v513 = vpack.c.b16 %v496, %v495
    %v514 = vpack.c.b16 %v498, %v497
    %531 = vmatpush.bf16.msra.mxu0 %v506
    %532 = vmatpush.bf16.msra.mxu0 %v505
    %533 = vmatpush.bf16.msra.mxu0 %v504
    %534 = vmatpush.bf16.msra.mxu0 %v503
    %535 = vmatpush.bf16.msra.mxu0 %v502
    %536 = vmatpush.bf16.msra.mxu0 %v501
    %537 = vmatpush.bf16.msra.mxu0 %v500
    %538 = vmatpush.bf16.msra.mxu0 %v499
    %539 = vmatmul.bf16.gmra.mxu0 %v214
    %v540 = vpop.f32.mrf.mxu0
    %v541 = vadd.f32 0.0, %v540
    %v542 = vpop.f32.mrf.mxu0
    %v543 = vadd.f32 0.0, %v542
    %544 = vdwg.mxu0
    %545 = vmatpush.bf16.msra.mxu0 %v514
    %546 = vmatpush.bf16.msra.mxu0 %v513
    %547 = vmatpush.bf16.msra.mxu0 %v512
    %548 = vmatpush.bf16.msra.mxu0 %v511
    %549 = vmatpush.bf16.msra.mxu0 %v510
    %550 = vmatpush.bf16.msra.mxu0 %v509
    %551 = vmatpush.bf16.msra.mxu0 %v508
    %552 = vmatpush.bf16.msra.mxu0 %v507
    %553 = vmatmul.bf16.gmra.mxu0 %v218
    %v554 = vpop.f32.mrf.mxu0
    %v555 = vadd.f32 %v541, %v554
    %v556 = vpop.f32.mrf.mxu0
    %v557 = vadd.f32 %v543, %v556
    %558 = vdwg.mxu0
    %v575 = vunpack.c.l.b16 %v387
    %v576 = vunpack.c.l.b16 %v388
    %v577 = vunpack.c.l.b16 %v389
    %v578 = vunpack.c.l.b16 %v390
    %v579 = vunpack.c.l.b16 %v391
    %v580 = vunpack.c.l.b16 %v392
    %v581 = vunpack.c.l.b16 %v393
    %v582 = vunpack.c.l.b16 %v394
    %v583 = vunpack.c.l.b16 %v395
    %v584 = vunpack.c.l.b16 %v396
    %v585 = vunpack.c.l.b16 %v397
    %v586 = vunpack.c.l.b16 %v398
    %v587 = vunpack.c.l.b16 %v399
    %v588 = vunpack.c.l.b16 %v400
    %v589 = vunpack.c.l.b16 %v401
    %v590 = vunpack.c.l.b16 %v402
    %v591 = vpack.c.b16 %v576, %v575
    %v592 = vpack.c.b16 %v578, %v577
    %v593 = vpack.c.b16 %v580, %v579
    %v594 = vpack.c.b16 %v582, %v581
    %v595 = vpack.c.b16 %v584, %v583
    %v596 = vpack.c.b16 %v586, %v585
    %v597 = vpack.c.b16 %v588, %v587
    %v598 = vpack.c.b16 %v590, %v589
    %607 = vmatpush.bf16.msra.mxu0 %v598
    %608 = vmatpush.bf16.msra.mxu0 %v597
    %609 = vmatpush.bf16.msra.mxu0 %v596
    %610 = vmatpush.bf16.msra.mxu0 %v595
    %611 = vmatpush.bf16.msra.mxu0 %v594
    %612 = vmatpush.bf16.msra.mxu0 %v593
    %613 = vmatpush.bf16.msra.mxu0 %v592
    %614 = vmatpush.bf16.msra.mxu0 %v591
    %615 = vmatmul.bf16.gmra.mxu0 %v386
    %v616 = vpop.f32.mrf.mxu0
    %v617 = vadd.f32 %v555, %v616
    %v618 = vpop.f32.mrf.mxu0
    %v619 = vadd.f32 %v557, %v618
    %620 = vdwg.mxu0
    %v621 = vld [vmem:[%s6] sm:$0x1]
    %v623 = vperm.slane %v621, 0
    %v625 = vadd.f32 %v617, %v623
    %v626 = vadd.f32 %v619, %v623
    %vm627 = vcmp.gt.f32.partialorder %v625, 0.0
    %vm628 = vcmp.gt.f32.partialorder %v626, 0.0
    %v629 = vmul.f32 %v625, 0.01
    %v630 = vmul.f32 %v626, 0.01
    %v631 = vsel %vm627, %v625, %v629
    %v632 = vsel %vm628, %v626, %v630
    %v633 = vpack.c.bf16 %v632, %v631
    %v634 = vld [vmem:[%s7] sm:$0xf]
    %v635 = vld [vmem:[%s7 + $0x4] sm:$0xf]
    %v636 = vld [vmem:[%s7 + $0x8] sm:$0xf]
    %v637 = vld [vmem:[%s7 + $0xc] sm:$0xf]
    %v638 = vld [vmem:[%s7 + $0x10] sm:$0xf]
    %v639 = vld [vmem:[%s7 + $0x14] sm:$0xf]
    %v640 = vld [vmem:[%s7 + $0x18] sm:$0xf]
    %v641 = vld [vmem:[%s7 + $0x1c] sm:$0xf]
    %v642 = vld [vmem:[%s8] sm:$0xf]
    %v643 = vld [vmem:[%s8 + $0x4] sm:$0xf]
    %v644 = vld [vmem:[%s8 + $0x8] sm:$0xf]
    %v645 = vld [vmem:[%s8 + $0xc] sm:$0xf]
    %v646 = vld [vmem:[%s8 + $0x10] sm:$0xf]
    %v647 = vld [vmem:[%s8 + $0x14] sm:$0xf]
    %v648 = vld [vmem:[%s8 + $0x18] sm:$0xf]
    %v649 = vld [vmem:[%s8 + $0x1c] sm:$0xf]
    %v650 = vld [vmem:[%s8 + $0x20] sm:$0xf]
    %v651 = vld [vmem:[%s8 + $0x24] sm:$0xf]
    %v652 = vld [vmem:[%s8 + $0x28] sm:$0xf]
    %v653 = vld [vmem:[%s8 + $0x2c] sm:$0xf]
    %v654 = vld [vmem:[%s8 + $0x30] sm:$0xf]
    %v655 = vld [vmem:[%s8 + $0x34] sm:$0xf]
    %v656 = vld [vmem:[%s8 + $0x38] sm:$0xf]
    %v657 = vld [vmem:[%s8 + $0x3c] sm:$0xf]
    %v658 = vld [vmem:[%s8 + $0x40] sm:$0xf]
    %v659 = vld [vmem:[%s8 + $0x44] sm:$0xf]
    %v660 = vld [vmem:[%s8 + $0x48] sm:$0xf]
    %v661 = vld [vmem:[%s8 + $0x4c] sm:$0xf]
    %v662 = vld [vmem:[%s8 + $0x50] sm:$0xf]
    %v663 = vld [vmem:[%s8 + $0x54] sm:$0xf]
    %v664 = vld [vmem:[%s8 + $0x58] sm:$0xf]
    %v665 = vld [vmem:[%s8 + $0x5c] sm:$0xf]
    %v666 = vld [vmem:[%s8 + $0x60] sm:$0xf]
    %v667 = vld [vmem:[%s8 + $0x64] sm:$0xf]
    %v668 = vld [vmem:[%s8 + $0x68] sm:$0xf]
    %v669 = vld [vmem:[%s8 + $0x6c] sm:$0xf]
    %v670 = vld [vmem:[%s8 + $0x70] sm:$0xf]
    %v671 = vld [vmem:[%s8 + $0x74] sm:$0xf]
    %v672 = vld [vmem:[%s8 + $0x78] sm:$0xf]
    %v673 = vld [vmem:[%s8 + $0x7c] sm:$0xf]
    %v706 = vunpack.c.l.b16 %v642
    %v707 = vunpack.c.l.b16 %v643
    %v708 = vunpack.c.l.b16 %v644
    %v709 = vunpack.c.l.b16 %v645
    %v710 = vunpack.c.l.b16 %v646
    %v711 = vunpack.c.l.b16 %v647
    %v712 = vunpack.c.l.b16 %v648
    %v713 = vunpack.c.l.b16 %v649
    %v714 = vunpack.c.l.b16 %v650
    %v715 = vunpack.c.l.b16 %v651
    %v716 = vunpack.c.l.b16 %v652
    %v717 = vunpack.c.l.b16 %v653
    %v718 = vunpack.c.l.b16 %v654
    %v719 = vunpack.c.l.b16 %v655
    %v720 = vunpack.c.l.b16 %v656
    %v721 = vunpack.c.l.b16 %v657
    %v722 = vunpack.c.l.b16 %v658
    %v723 = vunpack.c.l.b16 %v659
    %v724 = vunpack.c.l.b16 %v660
    %v725 = vunpack.c.l.b16 %v661
    %v726 = vunpack.c.l.b16 %v662
    %v727 = vunpack.c.l.b16 %v663
    %v728 = vunpack.c.l.b16 %v664
    %v729 = vunpack.c.l.b16 %v665
    %v730 = vunpack.c.l.b16 %v666
    %v731 = vunpack.c.l.b16 %v667
    %v732 = vunpack.c.l.b16 %v668
    %v733 = vunpack.c.l.b16 %v669
    %v734 = vunpack.c.l.b16 %v670
    %v735 = vunpack.c.l.b16 %v671
    %v736 = vunpack.c.l.b16 %v672
    %v737 = vunpack.c.l.b16 %v673
    %v738 = vpack.c.b16 %v707, %v706
    %v739 = vpack.c.b16 %v709, %v708
    %v740 = vpack.c.b16 %v711, %v710
    %v741 = vpack.c.b16 %v713, %v712
    %v742 = vpack.c.b16 %v715, %v714
    %v743 = vpack.c.b16 %v717, %v716
    %v744 = vpack.c.b16 %v719, %v718
    %v745 = vpack.c.b16 %v721, %v720
    %v746 = vpack.c.b16 %v723, %v722
    %v747 = vpack.c.b16 %v725, %v724
    %v748 = vpack.c.b16 %v727, %v726
    %v749 = vpack.c.b16 %v729, %v728
    %v750 = vpack.c.b16 %v731, %v730
    %v751 = vpack.c.b16 %v733, %v732
    %v752 = vpack.c.b16 %v735, %v734
    %v753 = vpack.c.b16 %v737, %v736
    %770 = vmatpush.bf16.msra.mxu0 %v745
    %771 = vmatpush.bf16.msra.mxu0 %v744
    %772 = vmatpush.bf16.msra.mxu0 %v743
    %773 = vmatpush.bf16.msra.mxu0 %v742
    %774 = vmatpush.bf16.msra.mxu0 %v741
    %775 = vmatpush.bf16.msra.mxu0 %v740
    %776 = vmatpush.bf16.msra.mxu0 %v739
    %777 = vmatpush.bf16.msra.mxu0 %v738
    %778 = vmatmul.bf16.gmra.mxu0 %v214
    %v779 = vpop.f32.mrf.mxu0
    %v780 = vadd.f32 0.0, %v779
    %v781 = vpop.f32.mrf.mxu0
    %v782 = vadd.f32 0.0, %v781
    %783 = vdwg.mxu0
    %784 = vmatpush.bf16.msra.mxu0 %v753
    %785 = vmatpush.bf16.msra.mxu0 %v752
    %786 = vmatpush.bf16.msra.mxu0 %v751
    %787 = vmatpush.bf16.msra.mxu0 %v750
    %788 = vmatpush.bf16.msra.mxu0 %v749
    %789 = vmatpush.bf16.msra.mxu0 %v748
    %790 = vmatpush.bf16.msra.mxu0 %v747
    %791 = vmatpush.bf16.msra.mxu0 %v746
    %792 = vmatmul.bf16.gmra.mxu0 %v218
    %v793 = vpop.f32.mrf.mxu0
    %v794 = vadd.f32 %v780, %v793
    %v795 = vpop.f32.mrf.mxu0
    %v796 = vadd.f32 %v782, %v795
    %797 = vdwg.mxu0
    %v806 = vunpack.c.l.b16 %v634
    %v807 = vunpack.c.l.b16 %v635
    %v808 = vunpack.c.l.b16 %v636
    %v809 = vunpack.c.l.b16 %v637
    %v810 = vunpack.c.l.b16 %v638
    %v811 = vunpack.c.l.b16 %v639
    %v812 = vunpack.c.l.b16 %v640
    %v813 = vunpack.c.l.b16 %v641
    %v814 = vpack.c.b16 %v807, %v806
    %v815 = vpack.c.b16 %v809, %v808
    %v816 = vpack.c.b16 %v811, %v810
    %v817 = vpack.c.b16 %v813, %v812
    %v823 = vsel %vm89, %v633, 0
    %825 = vmatpush.bf16.msra.mxu0 0
    %826 = vmatpush.bf16.msra.mxu0 0
    %827 = vmatpush.bf16.msra.mxu0 0
    %828 = vmatpush.bf16.msra.mxu0 0
    %829 = vmatpush.bf16.msra.mxu0 %v817
    %830 = vmatpush.bf16.msra.mxu0 %v816
    %831 = vmatpush.bf16.msra.mxu0 %v815
    %832 = vmatpush.bf16.msra.mxu0 %v814
    %833 = vmatmul.bf16.gmra.mxu0 %v823
    %v834 = vpop.f32.mrf.mxu0
    %v835 = vadd.f32 %v794, %v834
    %v836 = vpop.f32.mrf.mxu0
    %v837 = vadd.f32 %v796, %v836
    %838 = vdwg.mxu0
    %v839 = vld [vmem:[%s9] sm:$0x1]
    %v841 = vperm.slane %v839, 0
    %v843 = vadd.f32 %v835, %v841
    %v844 = vadd.f32 %v837, %v841
    %v845 = vmax.f32 %v843, 0.0
    %v846 = vmax.f32 %v844, 0.0
    %v847 = vld [vmem:[%s10] sm:$0xff]
    %v848 = vld [vmem:[%s10 + $0x8] sm:$0xff]
    %850 = vset.pattern.permute.xlu0 0
    %851 = vperm.xlu0 %850, %v845
    %v852 = vpop.permute.xlu0 %851
    %v854 = vmul.f32 %v852, %v847
    %v855 = vmul.f32 %v852, %v848
    %s856 = scalar_lea.vmem %s10, 16
    %v857 = vld [vmem:[%s856] sm:$0xff]
    %v858 = vld [vmem:[%s856 + $0x8] sm:$0xff]
    %859 = vset.pattern.permute.xlu0 1
    %860 = vperm.xlu0 %859, %v845
    %v861 = vpop.permute.xlu0 %860
    %v863 = vmul.f32 %v861, %v857
    %v864 = vmul.f32 %v861, %v858
    %v865 = vadd.f32 %v854, %v863
    %v866 = vadd.f32 %v855, %v864
    %s867 = scalar_lea.vmem %s10, 32
    %v868 = vld [vmem:[%s867] sm:$0xff]
    %v869 = vld [vmem:[%s867 + $0x8] sm:$0xff]
    %870 = vset.pattern.permute.xlu0 2
    %871 = vperm.xlu0 %870, %v845
    %v872 = vpop.permute.xlu0 %871
    %v874 = vmul.f32 %v872, %v868
    %v875 = vmul.f32 %v872, %v869
    %v876 = vadd.f32 %v865, %v874
    %v877 = vadd.f32 %v866, %v875
    %s878 = scalar_lea.vmem %s10, 48
    %v879 = vld [vmem:[%s878] sm:$0xff]
    %v880 = vld [vmem:[%s878 + $0x8] sm:$0xff]
    %881 = vset.pattern.permute.xlu0 3
    %882 = vperm.xlu0 %881, %v845
    %v883 = vpop.permute.xlu0 %882
    %v885 = vmul.f32 %v883, %v879
    %v886 = vmul.f32 %v883, %v880
    %v887 = vadd.f32 %v876, %v885
    %v888 = vadd.f32 %v877, %v886
    %s889 = scalar_lea.vmem %s10, 64
    %v890 = vld [vmem:[%s889] sm:$0xff]
    %v891 = vld [vmem:[%s889 + $0x8] sm:$0xff]
    %892 = vset.pattern.permute.xlu0 4
    %893 = vperm.xlu0 %892, %v845
    %v894 = vpop.permute.xlu0 %893
    %v896 = vmul.f32 %v894, %v890
    %v897 = vmul.f32 %v894, %v891
    %v898 = vadd.f32 %v887, %v896
    %v899 = vadd.f32 %v888, %v897
    %v900 = vrot.slane %v898, 4
    %v901 = vadd.f32 %v898, %v900
    %v902 = vrot.slane %v901, 2
    %v903 = vadd.f32 %v901, %v902
    %v904 = vrot.slane %v903, 1
    %v905 = vadd.f32 %v903, %v904
    %v906 = vrot.slane %v899, 4
    %v907 = vadd.f32 %v899, %v906
    %v908 = vrot.slane %v907, 2
    %v909 = vadd.f32 %v907, %v908
    %v910 = vrot.slane %v909, 1
    %v911 = vadd.f32 %v909, %v910
    %v914 = vrot.slane %v911, 7
    %vm915 = vcmask 1040384
    %v916 = vsel %vm915, %v905, %v914
    %v918 = vlaneseq
    %vm919 = vcmp.ge.s32.totalorder %v918, 0
    %vm920 = vcmp.lt.s32.totalorder %v918, 256
    %vm921 = vmand %vm919, %vm920
    %922 = vst.msk [vmem:[#allocation2] ss:$2 sm:$0x3] %vm921, %v916
    %v923 = vld [vmem:[%s10] sm:$0xff]
    %v924 = vld [vmem:[%s10 + $0x8] sm:$0xff]
    %926 = vset.pattern.permute.xlu0 0
    %927 = vperm.xlu0 %926, %v846
    %v928 = vpop.permute.xlu0 %927
    %v930 = vmul.f32 %v928, %v923
    %v931 = vmul.f32 %v928, %v924
    %v932 = vld [vmem:[%s856] sm:$0xff]
    %v933 = vld [vmem:[%s856 + $0x8] sm:$0xff]
    %934 = vset.pattern.permute.xlu0 1
    %935 = vperm.xlu0 %934, %v846
    %v936 = vpop.permute.xlu0 %935
    %v938 = vmul.f32 %v936, %v932
    %v939 = vmul.f32 %v936, %v933
    %v940 = vadd.f32 %v930, %v938
    %v941 = vadd.f32 %v931, %v939
    %v942 = vld [vmem:[%s867] sm:$0xff]
    %v943 = vld [vmem:[%s867 + $0x8] sm:$0xff]
    %944 = vset.pattern.permute.xlu0 2
    %945 = vperm.xlu0 %944, %v846
    %v946 = vpop.permute.xlu0 %945
    %v948 = vmul.f32 %v946, %v942
    %v949 = vmul.f32 %v946, %v943
    %v950 = vadd.f32 %v940, %v948
    %v951 = vadd.f32 %v941, %v949
    %v952 = vld [vmem:[%s878] sm:$0xff]
    %v953 = vld [vmem:[%s878 + $0x8] sm:$0xff]
    %954 = vset.pattern.permute.xlu0 3
    %955 = vperm.xlu0 %954, %v846
    %v956 = vpop.permute.xlu0 %955
    %v958 = vmul.f32 %v956, %v952
    %v959 = vmul.f32 %v956, %v953
    %v960 = vadd.f32 %v950, %v958
    %v961 = vadd.f32 %v951, %v959
    %v962 = vld [vmem:[%s889] sm:$0xff]
    %v963 = vld [vmem:[%s889 + $0x8] sm:$0xff]
    %964 = vset.pattern.permute.xlu0 4
    %965 = vperm.xlu0 %964, %v846
    %v966 = vpop.permute.xlu0 %965
    %v968 = vmul.f32 %v966, %v962
    %v969 = vmul.f32 %v966, %v963
    %v970 = vadd.f32 %v960, %v968
    %v971 = vadd.f32 %v961, %v969
    %v972 = vrot.slane %v970, 4
    %v973 = vadd.f32 %v970, %v972
    %v974 = vrot.slane %v973, 2
    %v975 = vadd.f32 %v973, %v974
    %v976 = vrot.slane %v975, 1
    %v977 = vadd.f32 %v975, %v976
    %v978 = vrot.slane %v971, 4
    %v979 = vadd.f32 %v971, %v978
    %v980 = vrot.slane %v979, 2
    %v981 = vadd.f32 %v979, %v980
    %v982 = vrot.slane %v981, 1
    %v983 = vadd.f32 %v981, %v982
    %v986 = vrot.slane %v983, 7
    %v987 = vsel %vm915, %v977, %v986
    %s989 = scalar_lea.vmem [#allocation2], 1
    %990 = vst.msk [vmem:[%s989] ss:$2 sm:$0x3] %vm921, %v987
    // Predicated region
    $region46: #{tpu_custom_call.1} parent=1 // pred_check
      _
    $region47: #{tpu_custom_call.1} parent=1 // pred_check_branch
      %992 = sbr.rel (0) target = $region49
    $region48: #{tpu_custom_call.1} parent=1 // pred_region
      %994 = vsyncadd [#allocation3], 0
      %s996 = sshll.u32 [#allocation2], 4
      %s997 = int_to_ptr.vmem [resolvable:$true] %s996
      %s998 = sshll.u32 %s11, 4
      %s999 = int_to_ptr.hbm [resolvable:$true] %s998
      %1001 = dma.vmem_to_hbm [thread:$0]  %s997, 64, %s999, [#allocation3]
    $region49: #{tpu_custom_call.1} parent=1 // pred_fallthru
      _
    // Predicated region
    $region50: #{tpu_custom_call.1} parent=1 // pred_check
      _
    $region51: #{tpu_custom_call.1} parent=1 // pred_check_branch
      %1003 = sbr.rel (0) target = $region53
    $region52: #{tpu_custom_call.1} parent=1 // pred_region
      %1005 = dma.done [#allocation3], 64
    $region53: #{tpu_custom_call.1} parent=1 // pred_fallthru
      _
    %1006 = vsyncpa [#allocation3], 1

</llo_original>
